<compile_context>
chip_gen: v7x
topology: tpu7x:2x2x1
jax: 0.10.0
libtpu: 0.0.40
codegen_flags: <defaults>
</compile_context>

<pallas_src>
import functools

import numpy as np
import jax
import jax.numpy as jnp
from jax.experimental import pallas as pl
from jax.experimental.pallas import tpu as pltpu

BH, BW = 6, 7
BOARD = BH * BW                   # 42 flattened board cells
KH = KW = 4
OH, OW = 3, 4
CIN, COUT = 1, 10
NPOS = OH * OW                    # 12 conv output positions (p = oh*4 + ow)
KSZ = KH * KW                     # 16 kernel taps          (k = kh*4 + kw)
PATCH = NPOS * KSZ                # 192 (only used while folding the weight)
F1_IN, F1_OUT = COUT * NPOS, 42   # 120 -> 42
F2_OUT, F3_OUT = 20, 7
OUT_PAD = 8                       # narrow padded output slab; real logits in [:, :7]


def _build_im2col_selector():
    # S[board_idx, p*16+k] = 1 iff board cell (oh+kh, ow+kw) is tap k of patch p.
    sel = np.zeros((BOARD, PATCH), np.float32)
    for oh in range(OH):
        for ow in range(OW):
            p = oh * OW + ow
            for kh in range(KH):
                for kw in range(KW):
                    k = kh * KW + kw
                    sel[(oh + kh) * BW + (ow + kw), p * KSZ + k] = 1.0
    return sel


_SEL = _build_im2col_selector()   # static (42, 192) selection matrix


def _dqn_kernel(x_ref, wconv_ref, bc_ref, w1_ref, b1_ref,
                w2_ref, b2_ref, w3_ref, b3_ref, out_ref):
    # conv folded to a single dense matmul on the raw board: output column
    # p*10+c equals torch's conv[c, p] (pre-ReLU), then bias + ReLU.
    conv = jnp.dot(x_ref[...], wconv_ref[...],
                   preferred_element_type=jnp.float32) + bc_ref[...]
    conv = jnp.maximum(conv, 0.0)                                    # (BT, 120)

    # fc1: single contraction; w1 pre-permuted to the p*10+c flatten order.
    h1 = jnp.maximum(
        jnp.dot(conv, w1_ref[...], preferred_element_type=jnp.float32)
        + b1_ref[...], 0.0)                                          # (BT, 42)

    # fc2 + ReLU
    h2 = jnp.maximum(
        jnp.dot(h1, w2_ref[...], preferred_element_type=jnp.float32)
        + b2_ref[...], 0.0)                                          # (BT, 20)

    # fc3 into a narrow (BT, 8) slab (col 7 is zero padding).
    out_ref[...] = (jnp.dot(h2, w3_ref[...], preferred_element_type=jnp.float32)
                    + b3_ref[...])                                   # (BT, 8)


def _round_up(n, m):
    return ((n + m - 1) // m) * m


def prepare_params(params):
    """One-time weight preparation (hoisted out of the per-call forward path)."""
    wc, bc, w1, b1, w2, b2, w3, b3 = params
    wc2 = wc.reshape(COUT, KSZ).astype(jnp.float32)                  # (10, 16)
    # Block-diagonal conv weight: Wbd[p*16+k, p*10+c] = wc[c, k]
    wbd = jnp.kron(jnp.eye(NPOS, dtype=jnp.float32), wc2.T)          # (192, 120)
    # Fold the im2col selection into it: kernel consumes the raw (B, 42) board.
    wconv = jnp.asarray(_SEL) @ wbd                                  # (42, 120)
    bc_t = jnp.tile(bc.astype(jnp.float32), NPOS).reshape(1, F1_IN)  # col p*10+c -> bc[c]
    # torch fc1 flat index is c*12+p; ours is p*10+c -> permute columns of w1.
    w1p = w1.reshape(F1_OUT, COUT, NPOS).transpose(2, 1, 0).reshape(F1_IN, F1_OUT)
    w1p = w1p.astype(jnp.float32)
    b1r = b1.reshape(1, F1_OUT).astype(jnp.float32)
    w2t = w2.T.astype(jnp.float32)                                   # (42, 20)
    b2r = b2.reshape(1, F2_OUT).astype(jnp.float32)
    w3t = jnp.pad(w3.T.astype(jnp.float32),
                  ((0, 0), (0, OUT_PAD - F3_OUT)))                   # (20, 8)
    b3r = jnp.pad(b3.reshape(1, F3_OUT).astype(jnp.float32),
                  ((0, 0), (0, OUT_PAD - F3_OUT)))
    return (wconv, bc_t, w1p, b1r, w2t, b2r, w3t, b3r)


@functools.partial(jax.jit, static_argnames=("block_b",))
def dqn_forward_batched(xb, prepared, *, block_b=1024):
    """Forward for a batch of boards xb: (B, 1, 6, 7) -> (B, 7)."""
    B = xb.shape[0]
    x_flat = xb.astype(jnp.float32).reshape(B, BOARD)                # (B, 42)
    wconv, bc_t, w1p, b1r, w2t, b2r, w3t, b3r = prepared

    # Tile selection: large tiles to amortize per-grid-step overhead, but keep
    # >= 2 grid steps when the batch allows so v7x's two TensorCores both work.
    bt_cap = _round_up(B, 8)
    if B >= 16:
        bt_cap = min(bt_cap, _round_up((B + 1) // 2, 8))
    bt = max(8, min(block_b, bt_cap))
    b_pad = _round_up(B, bt)
    x_flat = jnp.pad(x_flat, ((0, b_pad - B), (0, 0)))
    grid = (b_pad // bt,)

    def res(shape):                              # VMEM-resident across the grid
        return pl.BlockSpec(shape, lambda i: (0, 0))

    out = pl.pallas_call(
        _dqn_kernel,
        out_shape=jax.ShapeDtypeStruct((b_pad, OUT_PAD), jnp.float32),
        grid=grid,
        in_specs=[
            pl.BlockSpec((bt, BOARD), lambda i: (i, 0)),             # per-tile boards
            res((BOARD, F1_IN)), res((1, F1_IN)),                    # folded conv + bias
            res((F1_IN, F1_OUT)), res((1, F1_OUT)),                  # fc1
            res((F1_OUT, F2_OUT)), res((1, F2_OUT)),                 # fc2
            res((F2_OUT, OUT_PAD)), res((1, OUT_PAD)),               # fc3 (lane-padded)
        ],
        out_specs=pl.BlockSpec((bt, OUT_PAD), lambda i: (i, 0)),
        compiler_params=pltpu.CompilerParams(
            dimension_semantics=("parallel",)),
    )(x_flat, wconv, bc_t, w1p, b1r, w2t, b2r, w3t, b3r)
    return out[:B, :F3_OUT]


def dqn_forward(x, prepared):
    """Matches DeepQNetworkConnect4.forward: x (1, 6, 7) float32 -> (7,)."""
    return dqn_forward_batched(x[None], prepared)[0]


def init_params(key):
    ks = jax.random.split(key, 8)
    wc = jax.random.normal(ks[0], (COUT, CIN, KH, KW), jnp.float32) * 0.1
    bc = jax.random.normal(ks[1], (COUT,), jnp.float32) * 0.01
    w1 = jax.random.normal(ks[2], (F1_OUT, F1_IN), jnp.float32) * 0.1
    b1 = jax.random.normal(ks[3], (F1_OUT,), jnp.float32) * 0.01
    w2 = jax.random.normal(ks[4], (F2_OUT, F1_OUT), jnp.float32) * 0.1
    b2 = jax.random.normal(ks[5], (F2_OUT,), jnp.float32) * 0.01
    w3 = jax.random.normal(ks[6], (F3_OUT, F2_OUT), jnp.float32) * 0.1
    b3 = jax.random.normal(ks[7], (F3_OUT,), jnp.float32) * 0.01
    return (wc, bc, w1, b1, w2, b2, w3, b3)


def dqn_reference_batched(xb, params):
    # Pure-JAX reference matching the PyTorch forward, batched over leading dim.
    wc, bc, w1, b1, w2, b2, w3, b3 = params
    conv = jax.lax.conv_general_dilated(
        xb, wc, window_strides=(1, 1), padding="VALID",
        dimension_numbers=("NCHW", "OIHW", "NCHW"))
    conv = jax.nn.relu(conv + bc.reshape(1, COUT, 1, 1))             # (B, 10, 3, 4)
    flat = conv.reshape(xb.shape[0], F1_IN)
    h1 = jax.nn.relu(flat @ w1.T + b1)
    h2 = jax.nn.relu(h1 @ w2.T + b2)
    return h2 @ w3.T + b3


if __name__ == "__main__":
    key = jax.random.PRNGKey(0)
    kx, kb, kp = jax.random.split(key, 3)
    params = init_params(kp)
    prepared = prepare_params(params)        # hoisted: done once per param set

    # Single-board path: exact module semantics (x: (1, 6, 7) -> (7,)).
    x = jax.random.normal(kx, (1, 6, 7), jnp.float32)
    y = jax.block_until_ready(dqn_forward(x, prepared))
    y_ref = dqn_reference_batched(x[None], params)[0]
    assert y.shape == (F3_OUT,)
    assert jnp.allclose(y, y_ref, atol=1e-3, rtol=1e-3)

    # Batched throughput path: folded-conv input (B, 42), resident weights,
    # >= 2 parallel grid steps, narrow (B, 8) output slab.
    xb = jax.random.normal(kb, (256, 1, 6, 7), jnp.float32)
    yb = jax.block_until_ready(dqn_forward_batched(xb, prepared))
    yb_ref = dqn_reference_batched(xb, params)
    assert yb.shape == (256, F3_OUT)
    assert jnp.allclose(yb, yb_ref, atol=1e-3, rtol=1e-3)

    print("KERNEL_OK")
</pallas_src>

<mosaic_0001>
module attributes {stable_mosaic.version = 11 : i64} {
  func.func @_dqn_kernel(%arg0: i32, %arg1: memref<8x42xf32, #tpu.memory_space<vmem>>, %arg2: memref<42x120xf32, #tpu.memory_space<vmem>>, %arg3: memref<1x120xf32, #tpu.memory_space<vmem>>, %arg4: memref<120x42xf32, #tpu.memory_space<vmem>>, %arg5: memref<1x42xf32, #tpu.memory_space<vmem>>, %arg6: memref<42x20xf32, #tpu.memory_space<vmem>>, %arg7: memref<1x20xf32, #tpu.memory_space<vmem>>, %arg8: memref<20x8xf32, #tpu.memory_space<vmem>>, %arg9: memref<1x8xf32, #tpu.memory_space<vmem>>, %arg10: memref<8x8xf32, #tpu.memory_space<vmem>>) attributes {dimension_semantics = [#tpu.dimension_semantics<parallel>], iteration_bounds = array<i64: 1>, scalar_prefetch = 0 : i64, scratch_operands = 0 : i64, tpu.core_type = #tpu.core_type<tc>, window_params = [{transform_indices = @transform_0, window_bounds = array<i64: 8, 42>}, {pipeline_mode = #tpu.pipeline_mode<synchronous>, transform_indices = @transform_1, window_bounds = array<i64: 42, 120>}, {pipeline_mode = #tpu.pipeline_mode<synchronous>, transform_indices = @transform_2, window_bounds = array<i64: 1, 120>}, {pipeline_mode = #tpu.pipeline_mode<synchronous>, transform_indices = @transform_3, window_bounds = array<i64: 120, 42>}, {pipeline_mode = #tpu.pipeline_mode<synchronous>, transform_indices = @transform_4, window_bounds = array<i64: 1, 42>}, {pipeline_mode = #tpu.pipeline_mode<synchronous>, transform_indices = @transform_5, window_bounds = array<i64: 42, 20>}, {pipeline_mode = #tpu.pipeline_mode<synchronous>, transform_indices = @transform_6, window_bounds = array<i64: 1, 20>}, {pipeline_mode = #tpu.pipeline_mode<synchronous>, transform_indices = @transform_7, window_bounds = array<i64: 20, 8>}, {pipeline_mode = #tpu.pipeline_mode<synchronous>, transform_indices = @transform_8, window_bounds = array<i64: 1, 8>}, {transform_indices = @transform_9, window_bounds = array<i64: 8, 8>}]} {
    %c0 = arith.constant 0 : index
    %c0_0 = arith.constant 0 : index
    %0 = vector.load %arg1[%c0, %c0_0] : memref<8x42xf32, #tpu.memory_space<vmem>>, vector<8x42xf32>
    %c0_1 = arith.constant 0 : index
    %c0_2 = arith.constant 0 : index
    %1 = vector.load %arg2[%c0_1, %c0_2] : memref<42x120xf32, #tpu.memory_space<vmem>>, vector<42x120xf32>
    %cst = arith.constant dense<0.000000e+00> : vector<8x120xf32>
    %2 = tpu.matmul %0, %1, %cst {dimension_numbers = #tpu.dot_dimension_numbers<[1], [0], [0], [1], [0, 0, 1, 1], [], []>} : vector<8x42xf32>, vector<42x120xf32>, vector<8x120xf32> -> vector<8x120xf32>
    %c0_3 = arith.constant 0 : index
    %c0_4 = arith.constant 0 : index
    %3 = vector.load %arg3[%c0_3, %c0_4] : memref<1x120xf32, #tpu.memory_space<vmem>>, vector<1x120xf32>
    %4 = vector.broadcast %3 : vector<1x120xf32> to vector<8x120xf32>
    %5 = arith.addf %2, %4 : vector<8x120xf32>
    %cst_5 = arith.constant 0.000000e+00 : f32
    %6 = vector.broadcast %cst_5 : f32 to vector<8x120xf32>
    %7 = arith.maximumf %5, %6 : vector<8x120xf32>
    %c0_6 = arith.constant 0 : index
    %c0_7 = arith.constant 0 : index
    %8 = vector.load %arg4[%c0_6, %c0_7] : memref<120x42xf32, #tpu.memory_space<vmem>>, vector<120x42xf32>
    %cst_8 = arith.constant dense<0.000000e+00> : vector<8x42xf32>
    %9 = tpu.matmul %7, %8, %cst_8 {dimension_numbers = #tpu.dot_dimension_numbers<[1], [0], [0], [1], [0, 0, 1, 1], [], []>} : vector<8x120xf32>, vector<120x42xf32>, vector<8x42xf32> -> vector<8x42xf32>
    %c0_9 = arith.constant 0 : index
    %c0_10 = arith.constant 0 : index
    %10 = vector.load %arg5[%c0_9, %c0_10] : memref<1x42xf32, #tpu.memory_space<vmem>>, vector<1x42xf32>
    %11 = vector.broadcast %10 : vector<1x42xf32> to vector<8x42xf32>
    %12 = arith.addf %9, %11 : vector<8x42xf32>
    %cst_11 = arith.constant 0.000000e+00 : f32
    %13 = vector.broadcast %cst_11 : f32 to vector<8x42xf32>
    %14 = arith.maximumf %12, %13 : vector<8x42xf32>
    %c0_12 = arith.constant 0 : index
    %c0_13 = arith.constant 0 : index
    %15 = vector.load %arg6[%c0_12, %c0_13] : memref<42x20xf32, #tpu.memory_space<vmem>>, vector<42x20xf32>
    %cst_14 = arith.constant dense<0.000000e+00> : vector<8x20xf32>
    %16 = tpu.matmul %14, %15, %cst_14 {dimension_numbers = #tpu.dot_dimension_numbers<[1], [0], [0], [1], [0, 0, 1, 1], [], []>} : vector<8x42xf32>, vector<42x20xf32>, vector<8x20xf32> -> vector<8x20xf32>
    %c0_15 = arith.constant 0 : index
    %c0_16 = arith.constant 0 : index
    %17 = vector.load %arg7[%c0_15, %c0_16] : memref<1x20xf32, #tpu.memory_space<vmem>>, vector<1x20xf32>
    %18 = vector.broadcast %17 : vector<1x20xf32> to vector<8x20xf32>
    %19 = arith.addf %16, %18 : vector<8x20xf32>
    %cst_17 = arith.constant 0.000000e+00 : f32
    %20 = vector.broadcast %cst_17 : f32 to vector<8x20xf32>
    %21 = arith.maximumf %19, %20 : vector<8x20xf32>
    %c0_18 = arith.constant 0 : index
    %c0_19 = arith.constant 0 : index
    %22 = vector.load %arg8[%c0_18, %c0_19] : memref<20x8xf32, #tpu.memory_space<vmem>>, vector<20x8xf32>
    %cst_20 = arith.constant dense<0.000000e+00> : vector<8x8xf32>
    %23 = tpu.matmul %21, %22, %cst_20 {dimension_numbers = #tpu.dot_dimension_numbers<[1], [0], [0], [1], [0, 0, 1, 1], [], []>} : vector<8x20xf32>, vector<20x8xf32>, vector<8x8xf32> -> vector<8x8xf32>
    %c0_21 = arith.constant 0 : index
    %c0_22 = arith.constant 0 : index
    %24 = vector.load %arg9[%c0_21, %c0_22] : memref<1x8xf32, #tpu.memory_space<vmem>>, vector<1x8xf32>
    %25 = vector.broadcast %24 : vector<1x8xf32> to vector<8x8xf32>
    %26 = arith.addf %23, %25 : vector<8x8xf32>
    %c0_23 = arith.constant 0 : index
    %c0_24 = arith.constant 0 : index
    %27 = vector.load %arg10[%c0_23, %c0_24] : memref<8x8xf32, #tpu.memory_space<vmem>>, vector<8x8xf32>
    tpu.vector_store %arg10[%c0_23, %c0_24], %26 {strides = array<i32>} : memref<8x8xf32, #tpu.memory_space<vmem>>, vector<8x8xf32>,
    return
  }
  func.func @transform_0(%arg0: i32) -> (i32, i32) {
    %c0_i32 = arith.constant 0 : i32
    %c0_i32_0 = arith.constant 0 : i32
    return %arg0, %c0_i32 : i32, i32
  }
  func.func @transform_1(%arg0: i32) -> (i32, i32) {
    %c0_i32 = arith.constant 0 : i32
    %c0_i32_0 = arith.constant 0 : i32
    %c0_i32_1 = arith.constant 0 : i32
    return %c0_i32, %c0_i32_0 : i32, i32
  }
  func.func @transform_2(%arg0: i32) -> (i32, i32) {
    %c0_i32 = arith.constant 0 : i32
    %c0_i32_0 = arith.constant 0 : i32
    %c0_i32_1 = arith.constant 0 : i32
    return %c0_i32, %c0_i32_0 : i32, i32
  }
  func.func @transform_3(%arg0: i32) -> (i32, i32) {
    %c0_i32 = arith.constant 0 : i32
    %c0_i32_0 = arith.constant 0 : i32
    %c0_i32_1 = arith.constant 0 : i32
    return %c0_i32, %c0_i32_0 : i32, i32
  }
  func.func @transform_4(%arg0: i32) -> (i32, i32) {
    %c0_i32 = arith.constant 0 : i32
    %c0_i32_0 = arith.constant 0 : i32
    %c0_i32_1 = arith.constant 0 : i32
    return %c0_i32, %c0_i32_0 : i32, i32
  }
  func.func @transform_5(%arg0: i32) -> (i32, i32) {
    %c0_i32 = arith.constant 0 : i32
    %c0_i32_0 = arith.constant 0 : i32
    %c0_i32_1 = arith.constant 0 : i32
    return %c0_i32, %c0_i32_0 : i32, i32
  }
  func.func @transform_6(%arg0: i32) -> (i32, i32) {
    %c0_i32 = arith.constant 0 : i32
    %c0_i32_0 = arith.constant 0 : i32
    %c0_i32_1 = arith.constant 0 : i32
    return %c0_i32, %c0_i32_0 : i32, i32
  }
  func.func @transform_7(%arg0: i32) -> (i32, i32) {
    %c0_i32 = arith.constant 0 : i32
    %c0_i32_0 = arith.constant 0 : i32
    %c0_i32_1 = arith.constant 0 : i32
    return %c0_i32, %c0_i32_0 : i32, i32
  }
  func.func @transform_8(%arg0: i32) -> (i32, i32) {
    %c0_i32 = arith.constant 0 : i32
    %c0_i32_0 = arith.constant 0 : i32
    %c0_i32_1 = arith.constant 0 : i32
    return %c0_i32, %c0_i32_0 : i32, i32
  }
  func.func @transform_9(%arg0: i32) -> (i32, i32) {
    %c0_i32 = arith.constant 0 : i32
    %c0_i32_0 = arith.constant 0 : i32
    return %arg0, %c0_i32 : i32, i32
  }
}

</mosaic_0001>

<llo_original>
// kernel: dqn_forward_batched.1
$region0: #{dqn_forward_batched.1}
  #allocation0 [shape = 'u32[]', space=smem, size = 0x4, offset = 0x4, fixed_abs, tag = 'smem constant byte address 0x4 - core index']
  #allocation1 [shape = 'u32[144,128]{1,0:T(1,128)}', space=vmem, size = 0x12000, scoped, tag = 'internal scratch']
  %s0 = inlined_call_operand.vmem [shape: f32[8,42], index: 0, kind: input, shape index: {}]
  %s1 = inlined_call_operand.vmem [shape: f32[42,120], index: 1, kind: input, shape index: {}]
  %s2 = inlined_call_operand.vmem [shape: f32[1,120], index: 2, kind: input, shape index: {}]
  %s3 = inlined_call_operand.vmem [shape: f32[120,42], index: 3, kind: input, shape index: {}]
  %s4 = inlined_call_operand.vmem [shape: f32[1,42], index: 4, kind: input, shape index: {}]
  %s5 = inlined_call_operand.vmem [shape: f32[42,20], index: 5, kind: input, shape index: {}]
  %s6 = inlined_call_operand.vmem [shape: f32[1,20], index: 6, kind: input, shape index: {}]
  %s7 = inlined_call_operand.vmem [shape: f32[20,8], index: 7, kind: input, shape index: {}]
  %s8 = inlined_call_operand.vmem [shape: f32[1,8], index: 8, kind: input, shape index: {}]
  %s9 = inlined_call_operand.vmem [shape: f32[8,8], index: 9, kind: output, shape index: {}]
  %s10 = sld [smem:[#allocation0]]
  $region46: #{dqn_forward_batched.1} parent=0
    _
  %s12 = ssub.s32 1, %s10
  %s13 = scalar_select 0, %s12, %s10
  // Predicated region
  $region2: #{dqn_forward_batched.1} parent=0 // pred_check
    _
  $region3: #{dqn_forward_batched.1} parent=0 // pred_check_branch
    %15 = sbr.rel (0) target = $region5
  $region4: #{dqn_forward_batched.1} parent=0 // pred_region
    _
  $region5: #{dqn_forward_batched.1} parent=0 // pred_fallthru
    _
  // Predicated region
  $region6: #{dqn_forward_batched.1} parent=0 // pred_check
    _
  $region7: #{dqn_forward_batched.1} parent=0 // pred_check_branch
    %17 = sbr.rel (0) target = $region9
  $region8: #{dqn_forward_batched.1} parent=0 // pred_region
    _
  $region9: #{dqn_forward_batched.1} parent=0 // pred_fallthru
    _
  // Predicated region
  $region10: #{dqn_forward_batched.1} parent=0 // pred_check
    _
  $region11: #{dqn_forward_batched.1} parent=0 // pred_check_branch
    %19 = sbr.rel (0) target = $region13
  $region12: #{dqn_forward_batched.1} parent=0 // pred_region
    _
  $region13: #{dqn_forward_batched.1} parent=0 // pred_fallthru
    _
  // Predicated region
  $region14: #{dqn_forward_batched.1} parent=0 // pred_check
    _
  $region15: #{dqn_forward_batched.1} parent=0 // pred_check_branch
    %21 = sbr.rel (0) target = $region17
  $region16: #{dqn_forward_batched.1} parent=0 // pred_region
    _
  $region17: #{dqn_forward_batched.1} parent=0 // pred_fallthru
    _
  // Predicated region
  $region18: #{dqn_forward_batched.1} parent=0 // pred_check
    _
  $region19: #{dqn_forward_batched.1} parent=0 // pred_check_branch
    %23 = sbr.rel (0) target = $region21
  $region20: #{dqn_forward_batched.1} parent=0 // pred_region
    _
  $region21: #{dqn_forward_batched.1} parent=0 // pred_fallthru
    _
  // Predicated region
  $region22: #{dqn_forward_batched.1} parent=0 // pred_check
    _
  $region23: #{dqn_forward_batched.1} parent=0 // pred_check_branch
    %25 = sbr.rel (0) target = $region25
  $region24: #{dqn_forward_batched.1} parent=0 // pred_region
    _
  $region25: #{dqn_forward_batched.1} parent=0 // pred_fallthru
    _
  // Predicated region
  $region26: #{dqn_forward_batched.1} parent=0 // pred_check
    _
  $region27: #{dqn_forward_batched.1} parent=0 // pred_check_branch
    %27 = sbr.rel (0) target = $region29
  $region28: #{dqn_forward_batched.1} parent=0 // pred_region
    _
  $region29: #{dqn_forward_batched.1} parent=0 // pred_fallthru
    _
  // Predicated region
  $region30: #{dqn_forward_batched.1} parent=0 // pred_check
    _
  $region31: #{dqn_forward_batched.1} parent=0 // pred_check_branch
    %29 = sbr.rel (0) target = $region33
  $region32: #{dqn_forward_batched.1} parent=0 // pred_region
    _
  $region33: #{dqn_forward_batched.1} parent=0 // pred_fallthru
    _
  // Predicated region
  $region34: #{dqn_forward_batched.1} parent=0 // pred_check
    _
  $region35: #{dqn_forward_batched.1} parent=0 // pred_check_branch
    %31 = sbr.rel (0) target = $region37
  $region36: #{dqn_forward_batched.1} parent=0 // pred_region
    _
  $region37: #{dqn_forward_batched.1} parent=0 // pred_fallthru
    _
  %v32 = vld [vmem:[%s0] sm:$0xff]
  %v33 = vld [vmem:[%s1] sm:$0xff]
  %v34 = vld [vmem:[%s1 + $0x8] sm:$0xff]
  %v35 = vld [vmem:[%s1 + $0x10] sm:$0xff]
  %v36 = vld [vmem:[%s1 + $0x18] sm:$0xff]
  %v37 = vld [vmem:[%s1 + $0x20] sm:$0xff]
  %v38 = vld [vmem:[%s1 + $0x28] sm:$0x3]
  %v39 = vld [vmem:[%s2] sm:$0x1]
  %v41 = vlaneseq
  %v42 = vshrl.u32 %v41, 7
  %v43 = vsub.s32 0, %v42
  %v44 = vrot.slane %v39, %v43
  %vm46 = vcmask 343040
  %v48 = vsel %vm46, %v32, 0
  %vm50 = vcmask 1041408
  %v52 = vsel %vm50, %v38, 0
  %54 = vmatprep.subr.mxu0 0.0
  %55 = vmatpush1.msra.mxu0 %v33
  %56 = vmatprep.subr.mxu0 0.0
  %57 = vmatpush1.msra.mxu0 %v34
  %58 = vmatprep.subr.mxu0 0.0
  %59 = vmatpush1.msra.mxu0 %v35
  %60 = vmatprep.subr.mxu0 0.0
  %61 = vmatpush1.msra.mxu0 %v36
  %62 = vmatprep.subr.mxu0 0.0
  %63 = vmatpush1.msra.mxu0 %v37
  %64 = vmatprep.subr.mxu0 0.0
  %65 = vmatpush1.msra.mxu0 %v52
  %66 = vmatprep.subr.mxu0 0.0
  %67 = vmatpush1.msra.mxu0 0.0
  %68 = vmatprep.subr.mxu0 0.0
  %69 = vmatpush1.msra.mxu0 0.0
  %70 = vmatprep.subr.mxu0 0.0
  %71 = vmatpush1.msra.mxu0 0.0
  %72 = vmatprep.subr.mxu0 0.0
  %73 = vmatpush1.msra.mxu0 0.0
  %74 = vmatprep.subr.mxu0 0.0
  %75 = vmatpush1.msra.mxu0 0.0
  %76 = vmatprep.subr.mxu0 0.0
  %77 = vmatpush1.msra.mxu0 0.0
  %78 = vmatprep.subr.mxu0 0.0
  %79 = vmatpush1.msra.mxu0 0.0
  %80 = vmatprep.subr.mxu0 0.0
  %81 = vmatpush1.msra.mxu0 0.0
  %82 = vmatprep.subr.mxu0 0.0
  %83 = vmatpush1.msra.mxu0 0.0
  %84 = vmatprep.subr.mxu0 0.0
  %85 = vmatpush1.msra.mxu0 0.0
  %86 = vmatprep.subr.mxu0 0.0
  %87 = vmatpush1.msra.mxu0 0.0
  %88 = vmatprep.subr.mxu0 0.0
  %89 = vmatpush1.msra.mxu0 0.0
  %90 = vmatprep.subr.mxu0 0.0
  %91 = vmatpush1.msra.mxu0 0.0
  %92 = vmatprep.subr.mxu0 0.0
  %93 = vmatpush1.msra.mxu0 0.0
  %94 = vmatprep.subr.mxu0 0.0
  %95 = vmatpush1.msra.mxu0 0.0
  %96 = vmatprep.subr.mxu0 0.0
  %97 = vmatpush1.msra.mxu0 0.0
  %98 = vmatprep.subr.mxu0 0.0
  %99 = vmatpush1.msra.mxu0 0.0
  %100 = vmatprep.subr.mxu0 0.0
  %101 = vmatpush1.msra.mxu0 0.0
  %102 = vmatprep.subr.mxu0 0.0
  %103 = vmatpush1.msra.mxu0 0.0
  %104 = vmatprep.subr.mxu0 0.0
  %105 = vmatpush1.msra.mxu0 0.0
  %106 = vmatprep.subr.mxu0 0.0
  %107 = vmatpush1.msra.mxu0 0.0
  %108 = vmatprep.subr.mxu0 0.0
  %109 = vmatpush1.msra.mxu0 0.0
  %110 = vmatprep.subr.mxu0 0.0
  %111 = vmatpush1.msra.mxu0 0.0
  %112 = vmatprep.subr.mxu0 0.0
  %113 = vmatpush1.msra.mxu0 0.0
  %114 = vmatprep.subr.mxu0 0.0
  %115 = vmatpush1.msra.mxu0 0.0
  %116 = vmatprep.subr.mxu0 0.0
  %117 = vmatpush1.msra.mxu0 0.0
  %118 = vmatprep.mubr.f32.mxu0 0.0
  %119 = vmatmul.mubr.f32.gmra.mrb[0].mxu0 %v48
  %v120 = vpop.f32.mrb[0].mxu0
  %v121 = vadd.f32 %v44, %v120
  %v122 = vpop.f32.mrb[0].mxu0
  %123 = vdwg.mxu0
  %v124 = vmax.f32 %v121, 0.0
  %v125 = vld [vmem:[%s3] sm:$0xff]
  %v126 = vld [vmem:[%s3 + $0x8] sm:$0xff]
  %v127 = vld [vmem:[%s3 + $0x10] sm:$0xff]
  %v128 = vld [vmem:[%s3 + $0x18] sm:$0xff]
  %v129 = vld [vmem:[%s3 + $0x20] sm:$0xff]
  %v130 = vld [vmem:[%s3 + $0x28] sm:$0xff]
  %v131 = vld [vmem:[%s3 + $0x30] sm:$0xff]
  %v132 = vld [vmem:[%s3 + $0x38] sm:$0xff]
  %v133 = vld [vmem:[%s3 + $0x40] sm:$0xff]
  %v134 = vld [vmem:[%s3 + $0x48] sm:$0xff]
  %v135 = vld [vmem:[%s3 + $0x50] sm:$0xff]
  %v136 = vld [vmem:[%s3 + $0x58] sm:$0xff]
  %v137 = vld [vmem:[%s3 + $0x60] sm:$0xff]
  %v138 = vld [vmem:[%s3 + $0x68] sm:$0xff]
  %v139 = vld [vmem:[%s3 + $0x70] sm:$0xff]
  %v140 = vld [vmem:[%s4] sm:$0x1]
  %v142 = vlaneseq
  %v143 = vshrl.u32 %v142, 7
  %v144 = vsub.s32 0, %v143
  %v145 = vrot.slane %v140, %v144
  %vm147 = vcmask 982016
  %v149 = vsel %vm147, %v124, 0
  %151 = vmatprep.subr.mxu0 0.0
  %152 = vmatpush1.msra.mxu0 %v125
  %153 = vmatprep.subr.mxu0 0.0
  %154 = vmatpush1.msra.mxu0 %v126
  %155 = vmatprep.subr.mxu0 0.0
  %156 = vmatpush1.msra.mxu0 %v127
  %157 = vmatprep.subr.mxu0 0.0
  %158 = vmatpush1.msra.mxu0 %v128
  %159 = vmatprep.subr.mxu0 0.0
  %160 = vmatpush1.msra.mxu0 %v129
  %161 = vmatprep.subr.mxu0 0.0
  %162 = vmatpush1.msra.mxu0 %v130
  %163 = vmatprep.subr.mxu0 0.0
  %164 = vmatpush1.msra.mxu0 %v131
  %165 = vmatprep.subr.mxu0 0.0
  %166 = vmatpush1.msra.mxu0 %v132
  %167 = vmatprep.subr.mxu0 0.0
  %168 = vmatpush1.msra.mxu0 %v133
  %169 = vmatprep.subr.mxu0 0.0
  %170 = vmatpush1.msra.mxu0 %v134
  %171 = vmatprep.subr.mxu0 0.0
  %172 = vmatpush1.msra.mxu0 %v135
  %173 = vmatprep.subr.mxu0 0.0
  %174 = vmatpush1.msra.mxu0 %v136
  %175 = vmatprep.subr.mxu0 0.0
  %176 = vmatpush1.msra.mxu0 %v137
  %177 = vmatprep.subr.mxu0 0.0
  %178 = vmatpush1.msra.mxu0 %v138
  %179 = vmatprep.subr.mxu0 0.0
  %180 = vmatpush1.msra.mxu0 %v139
  %181 = vmatprep.subr.mxu0 0.0
  %182 = vmatpush1.msra.mxu0 0.0
  %183 = vmatprep.subr.mxu0 0.0
  %184 = vmatpush1.msra.mxu0 0.0
  %185 = vmatprep.subr.mxu0 0.0
  %186 = vmatpush1.msra.mxu0 0.0
  %187 = vmatprep.subr.mxu0 0.0
  %188 = vmatpush1.msra.mxu0 0.0
  %189 = vmatprep.subr.mxu0 0.0
  %190 = vmatpush1.msra.mxu0 0.0
  %191 = vmatprep.subr.mxu0 0.0
  %192 = vmatpush1.msra.mxu0 0.0
  %193 = vmatprep.subr.mxu0 0.0
  %194 = vmatpush1.msra.mxu0 0.0
  %195 = vmatprep.subr.mxu0 0.0
  %196 = vmatpush1.msra.mxu0 0.0
  %197 = vmatprep.subr.mxu0 0.0
  %198 = vmatpush1.msra.mxu0 0.0
  %199 = vmatprep.subr.mxu0 0.0
  %200 = vmatpush1.msra.mxu0 0.0
  %201 = vmatprep.subr.mxu0 0.0
  %202 = vmatpush1.msra.mxu0 0.0
  %203 = vmatprep.subr.mxu0 0.0
  %204 = vmatpush1.msra.mxu0 0.0
  %205 = vmatprep.subr.mxu0 0.0
  %206 = vmatpush1.msra.mxu0 0.0
  %207 = vmatprep.subr.mxu0 0.0
  %208 = vmatpush1.msra.mxu0 0.0
  %209 = vmatprep.subr.mxu0 0.0
  %210 = vmatpush1.msra.mxu0 0.0
  %211 = vmatprep.subr.mxu0 0.0
  %212 = vmatpush1.msra.mxu0 0.0
  %213 = vmatprep.subr.mxu0 0.0
  %214 = vmatpush1.msra.mxu0 0.0
  %215 = vmatprep.mubr.f32.mxu0 0.0
  %216 = vmatmul.mubr.f32.gmra.mrb[0].mxu0 %v149
  %v217 = vpop.f32.mrb[0].mxu0
  %v218 = vadd.f32 %v145, %v217
  %v219 = vpop.f32.mrb[0].mxu0
  %220 = vdwg.mxu0
  %v221 = vmax.f32 %v218, 0.0
  %v222 = vld [vmem:[%s5] sm:$0xff]
  %v223 = vld [vmem:[%s5 + $0x8] sm:$0xff]
  %v224 = vld [vmem:[%s5 + $0x10] sm:$0xff]
  %v225 = vld [vmem:[%s5 + $0x18] sm:$0xff]
  %v226 = vld [vmem:[%s5 + $0x20] sm:$0xff]
  %v227 = vld [vmem:[%s5 + $0x28] sm:$0x3]
  %v228 = vld [vmem:[%s6] sm:$0x1]
  %v230 = vlaneseq
  %v231 = vshrl.u32 %v230, 7
  %v232 = vsub.s32 0, %v231
  %v233 = vrot.slane %v228, %v232
  %v236 = vsel %vm46, %v221, 0
  %v239 = vsel %vm50, %v227, 0
  %241 = vmatprep.subr.mxu0 0.0
  %242 = vmatpush1.msra.mxu0 %v222
  %243 = vmatprep.subr.mxu0 0.0
  %244 = vmatpush1.msra.mxu0 %v223
  %245 = vmatprep.subr.mxu0 0.0
  %246 = vmatpush1.msra.mxu0 %v224
  %247 = vmatprep.subr.mxu0 0.0
  %248 = vmatpush1.msra.mxu0 %v225
  %249 = vmatprep.subr.mxu0 0.0
  %250 = vmatpush1.msra.mxu0 %v226
  %251 = vmatprep.subr.mxu0 0.0
  %252 = vmatpush1.msra.mxu0 %v239
  %253 = vmatprep.subr.mxu0 0.0
  %254 = vmatpush1.msra.mxu0 0.0
  %255 = vmatprep.subr.mxu0 0.0
  %256 = vmatpush1.msra.mxu0 0.0
  %257 = vmatprep.subr.mxu0 0.0
  %258 = vmatpush1.msra.mxu0 0.0
  %259 = vmatprep.subr.mxu0 0.0
  %260 = vmatpush1.msra.mxu0 0.0
  %261 = vmatprep.subr.mxu0 0.0
  %262 = vmatpush1.msra.mxu0 0.0
  %263 = vmatprep.subr.mxu0 0.0
  %264 = vmatpush1.msra.mxu0 0.0
  %265 = vmatprep.subr.mxu0 0.0
  %266 = vmatpush1.msra.mxu0 0.0
  %267 = vmatprep.subr.mxu0 0.0
  %268 = vmatpush1.msra.mxu0 0.0
  %269 = vmatprep.subr.mxu0 0.0
  %270 = vmatpush1.msra.mxu0 0.0
  %271 = vmatprep.subr.mxu0 0.0
  %272 = vmatpush1.msra.mxu0 0.0
  %273 = vmatprep.subr.mxu0 0.0
  %274 = vmatpush1.msra.mxu0 0.0
  %275 = vmatprep.subr.mxu0 0.0
  %276 = vmatpush1.msra.mxu0 0.0
  %277 = vmatprep.subr.mxu0 0.0
  %278 = vmatpush1.msra.mxu0 0.0
  %279 = vmatprep.subr.mxu0 0.0
  %280 = vmatpush1.msra.mxu0 0.0
  %281 = vmatprep.subr.mxu0 0.0
  %282 = vmatpush1.msra.mxu0 0.0
  %283 = vmatprep.subr.mxu0 0.0
  %284 = vmatpush1.msra.mxu0 0.0
  %285 = vmatprep.subr.mxu0 0.0
  %286 = vmatpush1.msra.mxu0 0.0
  %287 = vmatprep.subr.mxu0 0.0
  %288 = vmatpush1.msra.mxu0 0.0
  %289 = vmatprep.subr.mxu0 0.0
  %290 = vmatpush1.msra.mxu0 0.0
  %291 = vmatprep.subr.mxu0 0.0
  %292 = vmatpush1.msra.mxu0 0.0
  %293 = vmatprep.subr.mxu0 0.0
  %294 = vmatpush1.msra.mxu0 0.0
  %295 = vmatprep.subr.mxu0 0.0
  %296 = vmatpush1.msra.mxu0 0.0
  %297 = vmatprep.subr.mxu0 0.0
  %298 = vmatpush1.msra.mxu0 0.0
  %299 = vmatprep.subr.mxu0 0.0
  %300 = vmatpush1.msra.mxu0 0.0
  %301 = vmatprep.subr.mxu0 0.0
  %302 = vmatpush1.msra.mxu0 0.0
  %303 = vmatprep.subr.mxu0 0.0
  %304 = vmatpush1.msra.mxu0 0.0
  %305 = vmatprep.mubr.f32.mxu0 0.0
  %306 = vmatmul.mubr.f32.gmra.mrb[0].mxu0 %v236
  %v307 = vpop.f32.mrb[0].mxu0
  %v308 = vadd.f32 %v233, %v307
  %v309 = vpop.f32.mrb[0].mxu0
  %310 = vdwg.mxu0
  %v311 = vmax.f32 %v308, 0.0
  %v312 = vld [vmem:[%s7] sm:$0xff]
  %v313 = vld [vmem:[%s7 + $0x8] sm:$0xff]
  %v314 = vld [vmem:[%s7 + $0x10] sm:$0xf]
  %v315 = vld [vmem:[%s8] sm:$0x1]
  %v317 = vlaneseq
  %v318 = vshrl.u32 %v317, 7
  %v319 = vsub.s32 0, %v318
  %v320 = vrot.slane %v315, %v319
  %vm322 = vcmask 162816
  %v324 = vsel %vm322, %v311, 0
  %vm326 = vcmask 1043456
  %v328 = vsel %vm326, %v314, 0
  %330 = vmatprep.subr.mxu0 0.0
  %331 = vmatpush1.msra.mxu0 %v312
  %332 = vmatprep.subr.mxu0 0.0
  %333 = vmatpush1.msra.mxu0 %v313
  %334 = vmatprep.subr.mxu0 0.0
  %335 = vmatpush1.msra.mxu0 %v328
  %336 = vmatprep.subr.mxu0 0.0
  %337 = vmatpush1.msra.mxu0 0.0
  %338 = vmatprep.subr.mxu0 0.0
  %339 = vmatpush1.msra.mxu0 0.0
  %340 = vmatprep.subr.mxu0 0.0
  %341 = vmatpush1.msra.mxu0 0.0
  %342 = vmatprep.subr.mxu0 0.0
  %343 = vmatpush1.msra.mxu0 0.0
  %344 = vmatprep.subr.mxu0 0.0
  %345 = vmatpush1.msra.mxu0 0.0
  %346 = vmatprep.subr.mxu0 0.0
  %347 = vmatpush1.msra.mxu0 0.0
  %348 = vmatprep.subr.mxu0 0.0
  %349 = vmatpush1.msra.mxu0 0.0
  %350 = vmatprep.subr.mxu0 0.0
  %351 = vmatpush1.msra.mxu0 0.0
  %352 = vmatprep.subr.mxu0 0.0
  %353 = vmatpush1.msra.mxu0 0.0
  %354 = vmatprep.subr.mxu0 0.0
  %355 = vmatpush1.msra.mxu0 0.0
  %356 = vmatprep.subr.mxu0 0.0
  %357 = vmatpush1.msra.mxu0 0.0
  %358 = vmatprep.subr.mxu0 0.0
  %359 = vmatpush1.msra.mxu0 0.0
  %360 = vmatprep.subr.mxu0 0.0
  %361 = vmatpush1.msra.mxu0 0.0
  %362 = vmatprep.subr.mxu0 0.0
  %363 = vmatpush1.msra.mxu0 0.0
  %364 = vmatprep.subr.mxu0 0.0
  %365 = vmatpush1.msra.mxu0 0.0
  %366 = vmatprep.subr.mxu0 0.0
  %367 = vmatpush1.msra.mxu0 0.0
  %368 = vmatprep.subr.mxu0 0.0
  %369 = vmatpush1.msra.mxu0 0.0
  %370 = vmatprep.subr.mxu0 0.0
  %371 = vmatpush1.msra.mxu0 0.0
  %372 = vmatprep.subr.mxu0 0.0
  %373 = vmatpush1.msra.mxu0 0.0
  %374 = vmatprep.subr.mxu0 0.0
  %375 = vmatpush1.msra.mxu0 0.0
  %376 = vmatprep.subr.mxu0 0.0
  %377 = vmatpush1.msra.mxu0 0.0
  %378 = vmatprep.subr.mxu0 0.0
  %379 = vmatpush1.msra.mxu0 0.0
  %380 = vmatprep.subr.mxu0 0.0
  %381 = vmatpush1.msra.mxu0 0.0
  %382 = vmatprep.subr.mxu0 0.0
  %383 = vmatpush1.msra.mxu0 0.0
  %384 = vmatprep.subr.mxu0 0.0
  %385 = vmatpush1.msra.mxu0 0.0
  %386 = vmatprep.subr.mxu0 0.0
  %387 = vmatpush1.msra.mxu0 0.0
  %388 = vmatprep.subr.mxu0 0.0
  %389 = vmatpush1.msra.mxu0 0.0
  %390 = vmatprep.subr.mxu0 0.0
  %391 = vmatpush1.msra.mxu0 0.0
  %392 = vmatprep.subr.mxu0 0.0
  %393 = vmatpush1.msra.mxu0 0.0
  %394 = vmatprep.mubr.f32.mxu0 0.0
  %395 = vmatmul.mubr.f32.gmra.mrb[0].mxu0 %v324
  %v396 = vpop.f32.mrb[0].mxu0
  %v397 = vadd.f32 %v320, %v396
  %v398 = vpop.f32.mrb[0].mxu0
  %399 = vdwg.mxu0
  %vm400 = vcmask 64512
  %401 = vst.msk [vmem:[%s9] sm:$0xff] %vm400, %v397
  // Predicated region
  $region38: #{dqn_forward_batched.1} parent=0 // pred_check
    _
  $region39: #{dqn_forward_batched.1} parent=0 // pred_check_branch
    %403 = sbr.rel (0) target = $region41
  $region40: #{dqn_forward_batched.1} parent=0 // pred_region
    _
  $region41: #{dqn_forward_batched.1} parent=0 // pred_fallthru
    _
  // Predicated region
  $region42: #{dqn_forward_batched.1} parent=0 // pred_check
    _
  $region43: #{dqn_forward_batched.1} parent=0 // pred_check_branch
    %405 = sbr.rel (0) target = $region45
  $region44: #{dqn_forward_batched.1} parent=0 // pred_region
    _
  $region45: #{dqn_forward_batched.1} parent=0 // pred_fallthru
    _

</llo_original>
